<compile_context>
chip_gen: v7x
topology: tpu7x:2x2x1
jax: 0.10.0
libtpu: 0.0.40
codegen_flags: <defaults>
</compile_context>

<pallas_src>
import functools

import jax
import jax.numpy as jnp
from jax.experimental import pallas as pl
from jax.experimental.pallas import tpu as pltpu

EPS = 1e-6


def _round_up(n: int, m: int) -> int:
    return ((n + m - 1) // m) * m


def _vmem_capacity_bytes() -> int:
    try:
        return int(pltpu.get_tpu_info().vmem_capacity_bytes)
    except Exception:
        return 128 << 20  # v5e/v6e-sized default if the query is unavailable


def _block_spec(shape, index_map, *, buffers=None):
    """BlockSpec with an optional explicit buffer count (falls back if unsupported)."""
    if buffers is not None:
        try:
            return pl.BlockSpec(shape, index_map, pipeline_mode=pl.Buffered(buffers))
        except Exception:
            pass
    return pl.BlockSpec(shape, index_map)


def residual_kernel(alpha_ref, beta_ref, x_ref, wt_ref, b_ref, o_ref, normed_ref,
                    *, d_true: int):
    # alpha_ref/beta_ref : (1,) scalars in SMEM
    # x_ref     : (TILE_R, Dp)      padded input rows (block index constant across cols)
    # wt_ref    : (Dp, TILE_N)      bf16 W^T column panel (fully resident when TILE_N==Dp)
    # b_ref     : (1, TILE_N)       bias panel
    # o_ref     : (TILE_R, TILE_N)  output tile
    # normed_ref: (TILE_R, Dp)      bf16 scratch: LayerNorm output, computed once per row tile
    j = pl.program_id(1)

    @pl.when(j == 0)
    def _compute_layernorm():
        x = x_ref[...].astype(jnp.float32)
        # Two independent XLU reductions; zero-padded lanes contribute 0 to both sums,
        # so dividing by the TRUE feature count reproduces torch statistics exactly.
        s1 = jnp.sum(x, axis=-1, keepdims=True)
        s2 = jnp.sum(x * x, axis=-1, keepdims=True)
        inv_d = 1.0 / d_true
        inv_dm1 = 1.0 / max(d_true - 1, 1)        # torch .std() is unbiased (ddof = 1)
        mean = s1 * inv_d
        var = jnp.maximum((s2 - d_true * mean * mean) * inv_dm1, 0.0)
        inv_std = pl.reciprocal(jnp.sqrt(var) + EPS, approx=False)   # EUP slot
        alpha = alpha_ref[0]
        beta = beta_ref[0]
        normed = (x - mean) * (alpha * inv_std) + beta               # one VPU mul/elem
        normed_ref[...] = normed.astype(normed_ref.dtype)

    # sublayer Linear(D, D): bf16 MXU matmul with f32 accumulation on a W^T column panel.
    y = jnp.dot(normed_ref[...], wt_ref[...], preferred_element_type=jnp.float32)
    y = y + b_ref[...].astype(jnp.float32)

    # dropout (eval mode) == identity; residual add in f32, re-reading x columns from the
    # VMEM-resident tile instead of keeping a (TILE_R, Dp) f32 copy live across the matmul.
    tn = o_ref.shape[-1]
    col0 = pl.multiple_of(j * tn, 128)
    xs = x_ref[:, pl.ds(col0, tn)].astype(jnp.float32)
    o_ref[...] = (xs + y).astype(o_ref.dtype)


def prepare_linear_params(w, b, *, matmul_dtype=jnp.bfloat16):
    """One-time parameter prep (do NOT repeat per call): pad the feature dim to a
    lane-dense multiple of 128, pre-transpose W -> W^T and pre-cast it to bf16."""
    d = w.shape[0]
    dp = _round_up(d, 128)
    wt = jnp.transpose(w)                                            # (D_in, D_out)
    wt = jnp.pad(wt, ((0, dp - d), (0, dp - d))).astype(matmul_dtype)
    b2d = jnp.pad(b.reshape(1, d), ((0, 0), (0, dp - d))).astype(jnp.float32)
    return wt, b2d


def _choose_tiles(r_rows, dp, x_itemsize, w_itemsize, usable_vmem):
    """Pick (tile_r, tile_n) so the full working set (incl. f32 temporaries) fits VMEM."""
    r128 = _round_up(max(r_rows, 1), 128)
    desired_r = 512 if dp <= 512 else 256
    col_cands = [dp] + [t for t in (1024, 512, 256, 128) if t < dp and dp % t == 0]

    def footprint(tile_r, tile_n):
        n_col = dp // tile_n
        w_bufs = 1 if n_col == 1 else 2
        return (w_bufs * dp * tile_n * w_itemsize       # W^T panel(s)
                + w_bufs * tile_n * 4                   # bias panel(s)
                + 2 * tile_r * dp * x_itemsize          # x row tiles (double-buffered)
                + 2 * tile_r * tile_n * x_itemsize      # out tiles (double-buffered)
                + tile_r * dp * 2                       # bf16 normed scratch
                + 4 * tile_r * dp * 4)                  # f32 temporaries in stats block

    for tr in (desired_r, 256, 128):
        tile_r = min(tr, r128)
        for tile_n in col_cands:
            need = footprint(tile_r, tile_n)
            if need + (4 << 20) <= usable_vmem:
                return tile_r, tile_n, need
    tile_r, tile_n = min(128, r128), col_cands[-1]      # last resort (extreme D)
    return tile_r, tile_n, footprint(tile_r, tile_n)


@functools.partial(jax.jit, static_argnames=("d_true",))
def residual_connection(x, wt, b2d, alpha, beta, *, d_true):
    """x: (B, S, d_true).  wt/b2d come from prepare_linear_params (padded, W^T, bf16)."""
    B, S, D = x.shape
    assert D == d_true
    Dp = wt.shape[0]
    R = B * S

    usable_vmem = (_vmem_capacity_bytes() * 3) // 4     # ~96 MiB v5e/v6e, ~48 MiB v7x
    # x / stats / residual run in f32 regardless of input dtype -> budget with 4 bytes.
    tile_r, tile_n, need = _choose_tiles(R, Dp, 4, wt.dtype.itemsize, usable_vmem)

    Rp = _round_up(R, tile_r)
    x2d = x.reshape(R, D)
    if Rp != R or Dp != D:
        x2d = jnp.pad(x2d, ((0, Rp - R), (0, Dp - D)))

    n_row = Rp // tile_r
    n_col = Dp // tile_n
    w_bufs = 1 if n_col == 1 else None                  # single-buffer resident W / bias

    vmem_limit = int(max(min(need + (8 << 20), usable_vmem), 32 << 20))

    itemsize_x = x.dtype.itemsize
    cost = pl.CostEstimate(
        flops=2 * Rp * Dp * Dp,
        transcendentals=2 * Rp,                          # sqrt + reciprocal per row
        bytes_accessed=(Rp * Dp * itemsize_x             # read x
                        + Dp * Dp * wt.dtype.itemsize    # read W^T
                        + Dp * 4                         # read bias
                        + Rp * Dp * itemsize_x),         # write out
    )

    kernel = functools.partial(residual_kernel, d_true=d_true)

    out2d = pl.pallas_call(
        kernel,
        out_shape=jax.ShapeDtypeStruct((Rp, Dp), x.dtype),
        grid_spec=pltpu.PrefetchScalarGridSpec(
            num_scalar_prefetch=0,
            grid=(n_row, n_col),
            in_specs=[
                pl.BlockSpec(memory_space=pltpu.MemorySpace.SMEM),        # alpha (1,)
                pl.BlockSpec(memory_space=pltpu.MemorySpace.SMEM),        # beta  (1,)
                pl.BlockSpec((tile_r, Dp), lambda i, j: (i, 0)),          # x rows (const over j)
                _block_spec((Dp, tile_n), lambda i, j: (0, j), buffers=w_bufs),  # W^T panel
                _block_spec((1, tile_n), lambda i, j: (0, j), buffers=w_bufs),   # bias panel
            ],
            out_specs=pl.BlockSpec((tile_r, tile_n), lambda i, j: (i, j)),
            scratch_shapes=[pltpu.VMEM((tile_r, Dp), wt.dtype)],          # cached normed (bf16)
        ),
        compiler_params=pltpu.CompilerParams(
            dimension_semantics=("parallel", "arbitrary"),
            vmem_limit_bytes=vmem_limit,
        ),
        cost_estimate=cost,
    )(alpha, beta, x2d, wt, b2d)

    return out2d[:R, :D].reshape(B, S, D)


def reference(x, w, b, alpha, beta):
    xf = x.astype(jnp.float32)
    mean = jnp.mean(xf, axis=-1, keepdims=True)
    centered = xf - mean
    d = xf.shape[-1]
    std = jnp.sqrt(jnp.sum(centered * centered, axis=-1, keepdims=True) / (d - 1))
    normed = alpha[0] * centered / (std + EPS) + beta[0]
    y = normed @ w.T.astype(jnp.float32) + b.astype(jnp.float32)
    return (xf + y).astype(x.dtype)


if __name__ == "__main__":
    B, S, D = 2, 8, 32   # tiny demo dims; feature dim is zero-padded to 128 lanes internally
    key = jax.random.PRNGKey(0)
    kx, kw, kb = jax.random.split(key, 3)

    x = jax.random.normal(kx, (B, S, D), dtype=jnp.float32)
    # deterministic "sublayer": Linear(D, D) params (torch convention: y = h @ W^T + b)
    w = jax.random.normal(kw, (D, D), dtype=jnp.float32) * 0.05
    b = jax.random.normal(kb, (D,), dtype=jnp.float32) * 0.01
    # LayerNormalization params as initialized in __init__: ones(1), zeros(1)
    alpha = jnp.ones((1,), dtype=jnp.float32)
    beta = jnp.zeros((1,), dtype=jnp.float32)

    wt, b2d = prepare_linear_params(w, b)       # one-time: transpose + pad + bf16 cast
    out = residual_connection(x, wt, b2d, alpha, beta, d_true=D)
    out = jax.block_until_ready(out)

    ref = reference(x, w, b, alpha, beta)
    assert out.shape == (B, S, D)
    # tolerance covers the bf16 MXU matmul path (LayerNorm stats / residual stay in f32)
    assert jnp.allclose(out, ref, atol=2e-2, rtol=2e-2), "mismatch vs reference"
    print("KERNEL_OK")
</pallas_src>

<mosaic_0001>
module attributes {stable_mosaic.version = 11 : i64} {
  func.func @residual_kernel(%arg0: i32, %arg1: i32, %arg2: memref<1xf32, #tpu.memory_space<smem>>, %arg3: memref<1xf32, #tpu.memory_space<smem>>, %arg4: memref<128x128xf32, #tpu.memory_space<vmem>>, %arg5: memref<128x128xbf16, #tpu.memory_space<vmem>>, %arg6: memref<1x128xf32, #tpu.memory_space<vmem>>, %arg7: memref<128x128xf32, #tpu.memory_space<vmem>>, %arg8: memref<128x128xbf16, #tpu.memory_space<vmem>>) attributes {dimension_semantics = [#tpu.dimension_semantics<parallel>, #tpu.dimension_semantics<arbitrary>], iteration_bounds = array<i64: 1, 1>, scalar_prefetch = 0 : i64, scratch_operands = 1 : i64, tpu.core_type = #tpu.core_type<tc>, window_params = [{transform_indices = @transform_0, window_bounds = array<i64: 1>}, {transform_indices = @transform_1, window_bounds = array<i64: 1>}, {transform_indices = @transform_2, window_bounds = array<i64: 128, 128>}, {pipeline_mode = #tpu.pipeline_mode<synchronous>, transform_indices = @transform_3, window_bounds = array<i64: 128, 128>}, {pipeline_mode = #tpu.pipeline_mode<synchronous>, transform_indices = @transform_4, window_bounds = array<i64: 1, 128>}, {transform_indices = @transform_5, window_bounds = array<i64: 128, 128>}]} {
    %c0_i32 = arith.constant 0 : i32
    %0 = arith.cmpi eq, %arg1, %c0_i32 : i32
    %1 = arith.extui %0 : i1 to i32
    %c0_i32_0 = arith.constant 0 : i32
    %2 = arith.cmpi ne, %1, %c0_i32_0 : i32
    scf.if %2 {
      %c0_9 = arith.constant 0 : index
      %c0_10 = arith.constant 0 : index
      %15 = vector.load %arg4[%c0_9, %c0_10] : memref<128x128xf32, #tpu.memory_space<vmem>>, vector<128x128xf32>
      %cst_11 = arith.constant dense<0.000000e+00> : vector<128xf32>
      %16 = vector.multi_reduction <add>, %15, %cst_11 [1] : vector<128x128xf32> to vector<128xf32>
      %17 = vector.shape_cast %16 : vector<128xf32> to vector<128x1xf32>
      %18 = arith.mulf %15, %15 : vector<128x128xf32>
      %cst_12 = arith.constant dense<0.000000e+00> : vector<128xf32>
      %19 = vector.multi_reduction <add>, %18, %cst_12 [1] : vector<128x128xf32> to vector<128xf32>
      %20 = vector.shape_cast %19 : vector<128xf32> to vector<128x1xf32>
      %cst_13 = arith.constant 3.125000e-02 : f32
      %21 = vector.broadcast %cst_13 : f32 to vector<128x1xf32>
      %22 = arith.mulf %17, %21 : vector<128x1xf32>
      %cst_14 = arith.constant 3.200000e+01 : f32
      %23 = vector.broadcast %cst_14 : f32 to vector<128x1xf32>
      %24 = arith.mulf %23, %22 : vector<128x1xf32>
      %25 = arith.mulf %24, %22 : vector<128x1xf32>
      %26 = arith.subf %20, %25 : vector<128x1xf32>
      %cst_15 = arith.constant 0.0322580636 : f32
      %27 = vector.broadcast %cst_15 : f32 to vector<128x1xf32>
      %28 = arith.mulf %26, %27 : vector<128x1xf32>
      %cst_16 = arith.constant 0.000000e+00 : f32
      %29 = vector.broadcast %cst_16 : f32 to vector<128x1xf32>
      %30 = arith.maximumf %28, %29 : vector<128x1xf32>
      %31 = math.sqrt %30 : vector<128x1xf32>
      %cst_17 = arith.constant 9.99999997E-7 : f32
      %32 = vector.broadcast %cst_17 : f32 to vector<128x1xf32>
      %33 = arith.addf %31, %32 : vector<128x1xf32>
      %34 = tpu.reciprocal %33 : vector<128x1xf32> -> vector<128x1xf32>
      %c0_18 = arith.constant 0 : index
      %35 = memref.load %arg2[%c0_18] : memref<1xf32, #tpu.memory_space<smem>>
      %c0_19 = arith.constant 0 : index
      %36 = memref.load %arg3[%c0_19] : memref<1xf32, #tpu.memory_space<smem>>
      %37 = vector.broadcast %22 : vector<128x1xf32> to vector<128x128xf32>
      %38 = arith.subf %15, %37 : vector<128x128xf32>
      %39 = vector.broadcast %35 : f32 to vector<128x1xf32>
      %40 = arith.mulf %39, %34 : vector<128x1xf32>
      %41 = vector.broadcast %40 : vector<128x1xf32> to vector<128x128xf32>
      %42 = arith.mulf %38, %41 : vector<128x128xf32>
      %43 = vector.broadcast %36 : f32 to vector<128x128xf32>
      %44 = arith.addf %42, %43 : vector<128x128xf32>
      %45 = arith.truncf %44 : vector<128x128xf32> to vector<128x128xbf16>
      %c0_20 = arith.constant 0 : index
      %c0_21 = arith.constant 0 : index
      %46 = vector.load %arg8[%c0_20, %c0_21] : memref<128x128xbf16, #tpu.memory_space<vmem>>, vector<128x128xbf16>
      tpu.vector_store %arg8[%c0_20, %c0_21], %45 {strides = array<i32>} : memref<128x128xbf16, #tpu.memory_space<vmem>>, vector<128x128xbf16>,
    } else {
    }
    %c0 = arith.constant 0 : index
    %c0_1 = arith.constant 0 : index
    %3 = vector.load %arg8[%c0, %c0_1] : memref<128x128xbf16, #tpu.memory_space<vmem>>, vector<128x128xbf16>
    %c0_2 = arith.constant 0 : index
    %c0_3 = arith.constant 0 : index
    %4 = vector.load %arg5[%c0_2, %c0_3] : memref<128x128xbf16, #tpu.memory_space<vmem>>, vector<128x128xbf16>
    %cst = arith.constant dense<0.000000e+00> : vector<128x128xf32>
    %5 = tpu.matmul %3, %4, %cst {dimension_numbers = #tpu.dot_dimension_numbers<[1], [0], [0], [1], [0, 0, 1, 1], [], []>} : vector<128x128xbf16>, vector<128x128xbf16>, vector<128x128xf32> -> vector<128x128xf32>
    %c0_4 = arith.constant 0 : index
    %c0_5 = arith.constant 0 : index
    %6 = vector.load %arg6[%c0_4, %c0_5] : memref<1x128xf32, #tpu.memory_space<vmem>>, vector<1x128xf32>
    %7 = vector.broadcast %6 : vector<1x128xf32> to vector<128x128xf32>
    %8 = arith.addf %5, %7 : vector<128x128xf32>
    %c128_i32 = arith.constant 128 : i32
    %9 = arith.muli %arg1, %c128_i32 : i32
    %10 = tpu.assume_multiple %9, 128 : i32
    %c0_6 = arith.constant 0 : index
    %11 = arith.index_cast %10 : i32 to index
    %12 = vector.load %arg4[%c0_6, %11] : memref<128x128xf32, #tpu.memory_space<vmem>>, vector<128x128xf32>
    %13 = arith.addf %12, %8 : vector<128x128xf32>
    %c0_7 = arith.constant 0 : index
    %c0_8 = arith.constant 0 : index
    %14 = vector.load %arg7[%c0_7, %c0_8] : memref<128x128xf32, #tpu.memory_space<vmem>>, vector<128x128xf32>
    tpu.vector_store %arg7[%c0_7, %c0_8], %13 {strides = array<i32>} : memref<128x128xf32, #tpu.memory_space<vmem>>, vector<128x128xf32>,
    return
  }
  func.func @transform_0(%arg0: i32, %arg1: i32) -> i32 {
    %c0_i32 = arith.constant 0 : i32
    %c0_i32_0 = arith.constant 0 : i32
    return %c0_i32 : i32
  }
  func.func @transform_1(%arg0: i32, %arg1: i32) -> i32 {
    %c0_i32 = arith.constant 0 : i32
    %c0_i32_0 = arith.constant 0 : i32
    return %c0_i32 : i32
  }
  func.func @transform_2(%arg0: i32, %arg1: i32) -> (i32, i32) {
    %c0_i32 = arith.constant 0 : i32
    %c0_i32_0 = arith.constant 0 : i32
    return %arg0, %c0_i32 : i32, i32
  }
  func.func @transform_3(%arg0: i32, %arg1: i32) -> (i32, i32) {
    %c0_i32 = arith.constant 0 : i32
    %c0_i32_0 = arith.constant 0 : i32
    return %c0_i32, %arg1 : i32, i32
  }
  func.func @transform_4(%arg0: i32, %arg1: i32) -> (i32, i32) {
    %c0_i32 = arith.constant 0 : i32
    %c0_i32_0 = arith.constant 0 : i32
    return %c0_i32, %arg1 : i32, i32
  }
  func.func @transform_5(%arg0: i32, %arg1: i32) -> (i32, i32) {
    %c0_i32 = arith.constant 0 : i32
    return %arg0, %arg1 : i32, i32
  }
}

</mosaic_0001>

<llo_original>
// kernel: residual_connection.1
$region0: #{residual_connection.1}
  #allocation0 [shape = 'u32[]', space=smem, size = 0x4, offset = 0x4, fixed_abs, tag = 'smem constant byte address 0x4 - core index']
  #allocation1 [shape = 'u32[144,128]{1,0:T(1,128)}', space=vmem, size = 0x12000, scoped, tag = 'internal scratch']
  #allocation2 [shape = 'bf16[128,128]{1,0:T(16,128)(2,1)}', space=vmem, size = 0x8000, scoped, tag = 'scratch operand']
  #allocation3 [shape = 'f32[1]{0:T(128)S(6)}', space=smem, size = 0x200, scoped, tag = 'scoped memory for residual_connection.1']
  #allocation4 [shape = 'f32[1]{0:T(128)S(6)}', space=smem, size = 0x200, scoped, tag = 'scoped memory for residual_connection.1']
  %s0 = inlined_call_operand.<no memory space> [shape: f32[1], index: 0, kind: input, shape index: {}]
  %s1 = inlined_call_operand.<no memory space> [shape: f32[1], index: 1, kind: input, shape index: {}]
  %s2 = inlined_call_operand.vmem [shape: f32[128,128], index: 2, kind: input, shape index: {}]
  %s3 = inlined_call_operand.vmem [shape: bf16[128,128], index: 3, kind: input, shape index: {}]
  %s4 = inlined_call_operand.vmem [shape: f32[1,128], index: 4, kind: input, shape index: {}]
  %s5 = inlined_call_operand.vmem [shape: f32[128,128], index: 5, kind: output, shape index: {}]
  %s6 = sld [smem:[#allocation0]]
  $region34: #{residual_connection.1} parent=0
    _
  %s8 = ssub.s32 1, %s6
  %s9 = scalar_select 0, %s8, %s6
  %10 = sst [smem:[#allocation3]] %s0
  %11 = sst [smem:[#allocation4]] %s1
  // Predicated region
  $region2: #{residual_connection.1} parent=0 // pred_check
    _
  $region3: #{residual_connection.1} parent=0 // pred_check_branch
    %13 = sbr.rel (0) target = $region5
  $region4: #{residual_connection.1} parent=0 // pred_region
    _
  $region5: #{residual_connection.1} parent=0 // pred_fallthru
    _
  // Predicated region
  $region6: #{residual_connection.1} parent=0 // pred_check
    _
  $region7: #{residual_connection.1} parent=0 // pred_check_branch
    %15 = sbr.rel (0) target = $region9
  $region8: #{residual_connection.1} parent=0 // pred_region
    _
  $region9: #{residual_connection.1} parent=0 // pred_fallthru
    _
  // Predicated region
  $region10: #{residual_connection.1} parent=0 // pred_check
    _
  $region11: #{residual_connection.1} parent=0 // pred_check_branch
    %17 = sbr.rel (0) target = $region13
  $region12: #{residual_connection.1} parent=0 // pred_region
    _
  $region13: #{residual_connection.1} parent=0 // pred_fallthru
    _
  // Predicated region
  $region14: #{residual_connection.1} parent=0 // pred_check
    _
  $region15: #{residual_connection.1} parent=0 // pred_check_branch
    %19 = sbr.rel (0) target = $region17
  $region16: #{residual_connection.1} parent=0 // pred_region
    _
  $region17: #{residual_connection.1} parent=0 // pred_fallthru
    _
  // Predicated region
  $region18: #{residual_connection.1} parent=0 // pred_check
    _
  $region19: #{residual_connection.1} parent=0 // pred_check_branch
    %21 = sbr.rel (0) target = $region21
  $region20: #{residual_connection.1} parent=0 // pred_region
    _
  $region21: #{residual_connection.1} parent=0 // pred_fallthru
    _
  %p23 = scmp.eq.s32.totalorder 0, 0
  // Predicated region
  $region22: #{residual_connection.1} parent=0 // pred_check
    %p24 = pneg %p23
  $region23: #{residual_connection.1} parent=0 // pred_check_branch
    %26 = sbr.rel (%p24) target = $region25
  $region24: #{residual_connection.1} parent=0 // pred_region
    %v27 = vld [vmem:[%s2] sm:$0xff]
    %v28 = vld [vmem:[%s2 + $0x8] sm:$0xff]
    %v29 = vld [vmem:[%s2 + $0x10] sm:$0xff]
    %v30 = vld [vmem:[%s2 + $0x18] sm:$0xff]
    %v31 = vld [vmem:[%s2 + $0x20] sm:$0xff]
    %v32 = vld [vmem:[%s2 + $0x28] sm:$0xff]
    %v33 = vld [vmem:[%s2 + $0x30] sm:$0xff]
    %v34 = vld [vmem:[%s2 + $0x38] sm:$0xff]
    %v35 = vld [vmem:[%s2 + $0x40] sm:$0xff]
    %v36 = vld [vmem:[%s2 + $0x48] sm:$0xff]
    %v37 = vld [vmem:[%s2 + $0x50] sm:$0xff]
    %v38 = vld [vmem:[%s2 + $0x58] sm:$0xff]
    %v39 = vld [vmem:[%s2 + $0x60] sm:$0xff]
    %v40 = vld [vmem:[%s2 + $0x68] sm:$0xff]
    %v41 = vld [vmem:[%s2 + $0x70] sm:$0xff]
    %v42 = vld [vmem:[%s2 + $0x78] sm:$0xff]
    %43 = vadd.xlane.f32.xlu0 %v27
    %v44 = vpop.xlane.xlu0 %43
    %45 = vadd.xlane.f32.xlu0 %v28
    %v46 = vpop.xlane.xlu0 %45
    %47 = vadd.xlane.f32.xlu0 %v29
    %v48 = vpop.xlane.xlu0 %47
    %49 = vadd.xlane.f32.xlu0 %v30
    %v50 = vpop.xlane.xlu0 %49
    %51 = vadd.xlane.f32.xlu0 %v31
    %v52 = vpop.xlane.xlu0 %51
    %53 = vadd.xlane.f32.xlu0 %v32
    %v54 = vpop.xlane.xlu0 %53
    %55 = vadd.xlane.f32.xlu0 %v33
    %v56 = vpop.xlane.xlu0 %55
    %57 = vadd.xlane.f32.xlu0 %v34
    %v58 = vpop.xlane.xlu0 %57
    %59 = vadd.xlane.f32.xlu0 %v35
    %v60 = vpop.xlane.xlu0 %59
    %61 = vadd.xlane.f32.xlu0 %v36
    %v62 = vpop.xlane.xlu0 %61
    %63 = vadd.xlane.f32.xlu0 %v37
    %v64 = vpop.xlane.xlu0 %63
    %65 = vadd.xlane.f32.xlu0 %v38
    %v66 = vpop.xlane.xlu0 %65
    %67 = vadd.xlane.f32.xlu0 %v39
    %v68 = vpop.xlane.xlu0 %67
    %69 = vadd.xlane.f32.xlu0 %v40
    %v70 = vpop.xlane.xlu0 %69
    %71 = vadd.xlane.f32.xlu0 %v41
    %v72 = vpop.xlane.xlu0 %71
    %73 = vadd.xlane.f32.xlu0 %v42
    %v74 = vpop.xlane.xlu0 %73
    %v75 = vmul.f32 %v27, %v27
    %v76 = vmul.f32 %v28, %v28
    %v77 = vmul.f32 %v29, %v29
    %v78 = vmul.f32 %v30, %v30
    %v79 = vmul.f32 %v31, %v31
    %v80 = vmul.f32 %v32, %v32
    %v81 = vmul.f32 %v33, %v33
    %v82 = vmul.f32 %v34, %v34
    %v83 = vmul.f32 %v35, %v35
    %v84 = vmul.f32 %v36, %v36
    %v85 = vmul.f32 %v37, %v37
    %v86 = vmul.f32 %v38, %v38
    %v87 = vmul.f32 %v39, %v39
    %v88 = vmul.f32 %v40, %v40
    %v89 = vmul.f32 %v41, %v41
    %v90 = vmul.f32 %v42, %v42
    %91 = vadd.xlane.f32.xlu0 %v75
    %v92 = vpop.xlane.xlu0 %91
    %93 = vadd.xlane.f32.xlu0 %v76
    %v94 = vpop.xlane.xlu0 %93
    %95 = vadd.xlane.f32.xlu0 %v77
    %v96 = vpop.xlane.xlu0 %95
    %97 = vadd.xlane.f32.xlu0 %v78
    %v98 = vpop.xlane.xlu0 %97
    %99 = vadd.xlane.f32.xlu0 %v79
    %v100 = vpop.xlane.xlu0 %99
    %101 = vadd.xlane.f32.xlu0 %v80
    %v102 = vpop.xlane.xlu0 %101
    %103 = vadd.xlane.f32.xlu0 %v81
    %v104 = vpop.xlane.xlu0 %103
    %105 = vadd.xlane.f32.xlu0 %v82
    %v106 = vpop.xlane.xlu0 %105
    %107 = vadd.xlane.f32.xlu0 %v83
    %v108 = vpop.xlane.xlu0 %107
    %109 = vadd.xlane.f32.xlu0 %v84
    %v110 = vpop.xlane.xlu0 %109
    %111 = vadd.xlane.f32.xlu0 %v85
    %v112 = vpop.xlane.xlu0 %111
    %113 = vadd.xlane.f32.xlu0 %v86
    %v114 = vpop.xlane.xlu0 %113
    %115 = vadd.xlane.f32.xlu0 %v87
    %v116 = vpop.xlane.xlu0 %115
    %117 = vadd.xlane.f32.xlu0 %v88
    %v118 = vpop.xlane.xlu0 %117
    %119 = vadd.xlane.f32.xlu0 %v89
    %v120 = vpop.xlane.xlu0 %119
    %121 = vadd.xlane.f32.xlu0 %v90
    %v122 = vpop.xlane.xlu0 %121
    %v123 = vmul.f32 %v44, 0.03125
    %v124 = vmul.f32 %v46, 0.03125
    %v125 = vmul.f32 %v48, 0.03125
    %v126 = vmul.f32 %v50, 0.03125
    %v127 = vmul.f32 %v52, 0.03125
    %v128 = vmul.f32 %v54, 0.03125
    %v129 = vmul.f32 %v56, 0.03125
    %v130 = vmul.f32 %v58, 0.03125
    %v131 = vmul.f32 %v60, 0.03125
    %v132 = vmul.f32 %v62, 0.03125
    %v133 = vmul.f32 %v64, 0.03125
    %v134 = vmul.f32 %v66, 0.03125
    %v135 = vmul.f32 %v68, 0.03125
    %v136 = vmul.f32 %v70, 0.03125
    %v137 = vmul.f32 %v72, 0.03125
    %v138 = vmul.f32 %v74, 0.03125
    %v139 = vmul.f32 %v123, 32.0
    %v140 = vmul.f32 %v124, 32.0
    %v141 = vmul.f32 %v125, 32.0
    %v142 = vmul.f32 %v126, 32.0
    %v143 = vmul.f32 %v127, 32.0
    %v144 = vmul.f32 %v128, 32.0
    %v145 = vmul.f32 %v129, 32.0
    %v146 = vmul.f32 %v130, 32.0
    %v147 = vmul.f32 %v131, 32.0
    %v148 = vmul.f32 %v132, 32.0
    %v149 = vmul.f32 %v133, 32.0
    %v150 = vmul.f32 %v134, 32.0
    %v151 = vmul.f32 %v135, 32.0
    %v152 = vmul.f32 %v136, 32.0
    %v153 = vmul.f32 %v137, 32.0
    %v154 = vmul.f32 %v138, 32.0
    %v155 = vmul.f32 %v139, %v123
    %v156 = vmul.f32 %v140, %v124
    %v157 = vmul.f32 %v141, %v125
    %v158 = vmul.f32 %v142, %v126
    %v159 = vmul.f32 %v143, %v127
    %v160 = vmul.f32 %v144, %v128
    %v161 = vmul.f32 %v145, %v129
    %v162 = vmul.f32 %v146, %v130
    %v163 = vmul.f32 %v147, %v131
    %v164 = vmul.f32 %v148, %v132
    %v165 = vmul.f32 %v149, %v133
    %v166 = vmul.f32 %v150, %v134
    %v167 = vmul.f32 %v151, %v135
    %v168 = vmul.f32 %v152, %v136
    %v169 = vmul.f32 %v153, %v137
    %v170 = vmul.f32 %v154, %v138
    %v171 = vsub.f32 %v92, %v155
    %v172 = vsub.f32 %v94, %v156
    %v173 = vsub.f32 %v96, %v157
    %v174 = vsub.f32 %v98, %v158
    %v175 = vsub.f32 %v100, %v159
    %v176 = vsub.f32 %v102, %v160
    %v177 = vsub.f32 %v104, %v161
    %v178 = vsub.f32 %v106, %v162
    %v179 = vsub.f32 %v108, %v163
    %v180 = vsub.f32 %v110, %v164
    %v181 = vsub.f32 %v112, %v165
    %v182 = vsub.f32 %v114, %v166
    %v183 = vsub.f32 %v116, %v167
    %v184 = vsub.f32 %v118, %v168
    %v185 = vsub.f32 %v120, %v169
    %v186 = vsub.f32 %v122, %v170
    %v187 = vmul.f32 %v171, 0.032258064
    %v188 = vmul.f32 %v172, 0.032258064
    %v189 = vmul.f32 %v173, 0.032258064
    %v190 = vmul.f32 %v174, 0.032258064
    %v191 = vmul.f32 %v175, 0.032258064
    %v192 = vmul.f32 %v176, 0.032258064
    %v193 = vmul.f32 %v177, 0.032258064
    %v194 = vmul.f32 %v178, 0.032258064
    %v195 = vmul.f32 %v179, 0.032258064
    %v196 = vmul.f32 %v180, 0.032258064
    %v197 = vmul.f32 %v181, 0.032258064
    %v198 = vmul.f32 %v182, 0.032258064
    %v199 = vmul.f32 %v183, 0.032258064
    %v200 = vmul.f32 %v184, 0.032258064
    %v201 = vmul.f32 %v185, 0.032258064
    %v202 = vmul.f32 %v186, 0.032258064
    %v203 = vmax.f32 %v187, 0.0
    %v204 = vmax.f32 %v188, 0.0
    %v205 = vmax.f32 %v189, 0.0
    %v206 = vmax.f32 %v190, 0.0
    %v207 = vmax.f32 %v191, 0.0
    %v208 = vmax.f32 %v192, 0.0
    %v209 = vmax.f32 %v193, 0.0
    %v210 = vmax.f32 %v194, 0.0
    %v211 = vmax.f32 %v195, 0.0
    %v212 = vmax.f32 %v196, 0.0
    %v213 = vmax.f32 %v197, 0.0
    %v214 = vmax.f32 %v198, 0.0
    %v215 = vmax.f32 %v199, 0.0
    %v216 = vmax.f32 %v200, 0.0
    %v217 = vmax.f32 %v201, 0.0
    %v218 = vmax.f32 %v202, 0.0
    %v219 = vrsqrt.pop %v203
    %v220 = vmul.f32 %v203, %v219
    %vm221 = vcmp.eq.f32.partialorder %v203, inf
    %v222 = vsel %vm221, %v203, %v220
    %vm223 = vcmp.eq.f32.partialorder %v203, 0.0
    %v224 = vand.u32 %v203, 2147483648
    %v225 = vsel %vm223, %v224, %v222
    %v226 = vrsqrt.pop %v204
    %v227 = vmul.f32 %v204, %v226
    %vm228 = vcmp.eq.f32.partialorder %v204, inf
    %v229 = vsel %vm228, %v204, %v227
    %vm230 = vcmp.eq.f32.partialorder %v204, 0.0
    %v231 = vand.u32 %v204, 2147483648
    %v232 = vsel %vm230, %v231, %v229
    %v233 = vrsqrt.pop %v205
    %v234 = vmul.f32 %v205, %v233
    %vm235 = vcmp.eq.f32.partialorder %v205, inf
    %v236 = vsel %vm235, %v205, %v234
    %vm237 = vcmp.eq.f32.partialorder %v205, 0.0
    %v238 = vand.u32 %v205, 2147483648
    %v239 = vsel %vm237, %v238, %v236
    %v240 = vrsqrt.pop %v206
    %v241 = vmul.f32 %v206, %v240
    %vm242 = vcmp.eq.f32.partialorder %v206, inf
    %v243 = vsel %vm242, %v206, %v241
    %vm244 = vcmp.eq.f32.partialorder %v206, 0.0
    %v245 = vand.u32 %v206, 2147483648
    %v246 = vsel %vm244, %v245, %v243
    %v247 = vrsqrt.pop %v207
    %v248 = vmul.f32 %v207, %v247
    %vm249 = vcmp.eq.f32.partialorder %v207, inf
    %v250 = vsel %vm249, %v207, %v248
    %vm251 = vcmp.eq.f32.partialorder %v207, 0.0
    %v252 = vand.u32 %v207, 2147483648
    %v253 = vsel %vm251, %v252, %v250
    %v254 = vrsqrt.pop %v208
    %v255 = vmul.f32 %v208, %v254
    %vm256 = vcmp.eq.f32.partialorder %v208, inf
    %v257 = vsel %vm256, %v208, %v255
    %vm258 = vcmp.eq.f32.partialorder %v208, 0.0
    %v259 = vand.u32 %v208, 2147483648
    %v260 = vsel %vm258, %v259, %v257
    %v261 = vrsqrt.pop %v209
    %v262 = vmul.f32 %v209, %v261
    %vm263 = vcmp.eq.f32.partialorder %v209, inf
    %v264 = vsel %vm263, %v209, %v262
    %vm265 = vcmp.eq.f32.partialorder %v209, 0.0
    %v266 = vand.u32 %v209, 2147483648
    %v267 = vsel %vm265, %v266, %v264
    %v268 = vrsqrt.pop %v210
    %v269 = vmul.f32 %v210, %v268
    %vm270 = vcmp.eq.f32.partialorder %v210, inf
    %v271 = vsel %vm270, %v210, %v269
    %vm272 = vcmp.eq.f32.partialorder %v210, 0.0
    %v273 = vand.u32 %v210, 2147483648
    %v274 = vsel %vm272, %v273, %v271
    %v275 = vrsqrt.pop %v211
    %v276 = vmul.f32 %v211, %v275
    %vm277 = vcmp.eq.f32.partialorder %v211, inf
    %v278 = vsel %vm277, %v211, %v276
    %vm279 = vcmp.eq.f32.partialorder %v211, 0.0
    %v280 = vand.u32 %v211, 2147483648
    %v281 = vsel %vm279, %v280, %v278
    %v282 = vrsqrt.pop %v212
    %v283 = vmul.f32 %v212, %v282
    %vm284 = vcmp.eq.f32.partialorder %v212, inf
    %v285 = vsel %vm284, %v212, %v283
    %vm286 = vcmp.eq.f32.partialorder %v212, 0.0
    %v287 = vand.u32 %v212, 2147483648
    %v288 = vsel %vm286, %v287, %v285
    %v289 = vrsqrt.pop %v213
    %v290 = vmul.f32 %v213, %v289
    %vm291 = vcmp.eq.f32.partialorder %v213, inf
    %v292 = vsel %vm291, %v213, %v290
    %vm293 = vcmp.eq.f32.partialorder %v213, 0.0
    %v294 = vand.u32 %v213, 2147483648
    %v295 = vsel %vm293, %v294, %v292
    %v296 = vrsqrt.pop %v214
    %v297 = vmul.f32 %v214, %v296
    %vm298 = vcmp.eq.f32.partialorder %v214, inf
    %v299 = vsel %vm298, %v214, %v297
    %vm300 = vcmp.eq.f32.partialorder %v214, 0.0
    %v301 = vand.u32 %v214, 2147483648
    %v302 = vsel %vm300, %v301, %v299
    %v303 = vrsqrt.pop %v215
    %v304 = vmul.f32 %v215, %v303
    %vm305 = vcmp.eq.f32.partialorder %v215, inf
    %v306 = vsel %vm305, %v215, %v304
    %vm307 = vcmp.eq.f32.partialorder %v215, 0.0
    %v308 = vand.u32 %v215, 2147483648
    %v309 = vsel %vm307, %v308, %v306
    %v310 = vrsqrt.pop %v216
    %v311 = vmul.f32 %v216, %v310
    %vm312 = vcmp.eq.f32.partialorder %v216, inf
    %v313 = vsel %vm312, %v216, %v311
    %vm314 = vcmp.eq.f32.partialorder %v216, 0.0
    %v315 = vand.u32 %v216, 2147483648
    %v316 = vsel %vm314, %v315, %v313
    %v317 = vrsqrt.pop %v217
    %v318 = vmul.f32 %v217, %v317
    %vm319 = vcmp.eq.f32.partialorder %v217, inf
    %v320 = vsel %vm319, %v217, %v318
    %vm321 = vcmp.eq.f32.partialorder %v217, 0.0
    %v322 = vand.u32 %v217, 2147483648
    %v323 = vsel %vm321, %v322, %v320
    %v324 = vrsqrt.pop %v218
    %v325 = vmul.f32 %v218, %v324
    %vm326 = vcmp.eq.f32.partialorder %v218, inf
    %v327 = vsel %vm326, %v218, %v325
    %vm328 = vcmp.eq.f32.partialorder %v218, 0.0
    %v329 = vand.u32 %v218, 2147483648
    %v330 = vsel %vm328, %v329, %v327
    %v331 = vadd.f32 %v225, 1e-06
    %v332 = vadd.f32 %v232, 1e-06
    %v333 = vadd.f32 %v239, 1e-06
    %v334 = vadd.f32 %v246, 1e-06
    %v335 = vadd.f32 %v253, 1e-06
    %v336 = vadd.f32 %v260, 1e-06
    %v337 = vadd.f32 %v267, 1e-06
    %v338 = vadd.f32 %v274, 1e-06
    %v339 = vadd.f32 %v281, 1e-06
    %v340 = vadd.f32 %v288, 1e-06
    %v341 = vadd.f32 %v295, 1e-06
    %v342 = vadd.f32 %v302, 1e-06
    %v343 = vadd.f32 %v309, 1e-06
    %v344 = vadd.f32 %v316, 1e-06
    %v345 = vadd.f32 %v323, 1e-06
    %v346 = vadd.f32 %v330, 1e-06
    %v347 = vrcp.pop %v331
    %v348 = vrcp.pop %v332
    %v349 = vrcp.pop %v333
    %v350 = vrcp.pop %v334
    %v351 = vrcp.pop %v335
    %v352 = vrcp.pop %v336
    %v353 = vrcp.pop %v337
    %v354 = vrcp.pop %v338
    %v355 = vrcp.pop %v339
    %v356 = vrcp.pop %v340
    %v357 = vrcp.pop %v341
    %v358 = vrcp.pop %v342
    %v359 = vrcp.pop %v343
    %v360 = vrcp.pop %v344
    %v361 = vrcp.pop %v345
    %v362 = vrcp.pop %v346
    %s363 = sld [smem:[#allocation3]]
    %s364 = sld [smem:[#allocation4]]
    %v365 = vsub.f32 %v27, %v123
    %v366 = vsub.f32 %v28, %v124
    %v367 = vsub.f32 %v29, %v125
    %v368 = vsub.f32 %v30, %v126
    %v369 = vsub.f32 %v31, %v127
    %v370 = vsub.f32 %v32, %v128
    %v371 = vsub.f32 %v33, %v129
    %v372 = vsub.f32 %v34, %v130
    %v373 = vsub.f32 %v35, %v131
    %v374 = vsub.f32 %v36, %v132
    %v375 = vsub.f32 %v37, %v133
    %v376 = vsub.f32 %v38, %v134
    %v377 = vsub.f32 %v39, %v135
    %v378 = vsub.f32 %v40, %v136
    %v379 = vsub.f32 %v41, %v137
    %v380 = vsub.f32 %v42, %v138
    %v381 = vstv %s363
    %v382 = vmul.f32 %v381, %v347
    %v383 = vmul.f32 %v381, %v348
    %v384 = vmul.f32 %v381, %v349
    %v385 = vmul.f32 %v381, %v350
    %v386 = vmul.f32 %v381, %v351
    %v387 = vmul.f32 %v381, %v352
    %v388 = vmul.f32 %v381, %v353
    %v389 = vmul.f32 %v381, %v354
    %v390 = vmul.f32 %v381, %v355
    %v391 = vmul.f32 %v381, %v356
    %v392 = vmul.f32 %v381, %v357
    %v393 = vmul.f32 %v381, %v358
    %v394 = vmul.f32 %v381, %v359
    %v395 = vmul.f32 %v381, %v360
    %v396 = vmul.f32 %v381, %v361
    %v397 = vmul.f32 %v381, %v362
    %v398 = vmul.f32 %v365, %v382
    %v399 = vmul.f32 %v366, %v383
    %v400 = vmul.f32 %v367, %v384
    %v401 = vmul.f32 %v368, %v385
    %v402 = vmul.f32 %v369, %v386
    %v403 = vmul.f32 %v370, %v387
    %v404 = vmul.f32 %v371, %v388
    %v405 = vmul.f32 %v372, %v389
    %v406 = vmul.f32 %v373, %v390
    %v407 = vmul.f32 %v374, %v391
    %v408 = vmul.f32 %v375, %v392
    %v409 = vmul.f32 %v376, %v393
    %v410 = vmul.f32 %v377, %v394
    %v411 = vmul.f32 %v378, %v395
    %v412 = vmul.f32 %v379, %v396
    %v413 = vmul.f32 %v380, %v397
    %v414 = vstv %s364
    %v415 = vadd.f32 %v398, %v414
    %v416 = vadd.f32 %v399, %v414
    %v417 = vadd.f32 %v400, %v414
    %v418 = vadd.f32 %v401, %v414
    %v419 = vadd.f32 %v402, %v414
    %v420 = vadd.f32 %v403, %v414
    %v421 = vadd.f32 %v404, %v414
    %v422 = vadd.f32 %v405, %v414
    %v423 = vadd.f32 %v406, %v414
    %v424 = vadd.f32 %v407, %v414
    %v425 = vadd.f32 %v408, %v414
    %v426 = vadd.f32 %v409, %v414
    %v427 = vadd.f32 %v410, %v414
    %v428 = vadd.f32 %v411, %v414
    %v429 = vadd.f32 %v412, %v414
    %v430 = vadd.f32 %v413, %v414
    %v431 = vpack.c.bf16 %v416, %v415
    %v432 = vpack.c.bf16 %v418, %v417
    %v433 = vpack.c.bf16 %v420, %v419
    %v434 = vpack.c.bf16 %v422, %v421
    %v435 = vpack.c.bf16 %v424, %v423
    %v436 = vpack.c.bf16 %v426, %v425
    %v437 = vpack.c.bf16 %v428, %v427
    %v438 = vpack.c.bf16 %v430, %v429
    %439 = vst [vmem:[#allocation2] sm:$0xff] %v431
    %440 = vst [vmem:[#allocation2 + $0x8] sm:$0xff] %v432
    %441 = vst [vmem:[#allocation2 + $0x10] sm:$0xff] %v433
    %442 = vst [vmem:[#allocation2 + $0x18] sm:$0xff] %v434
    %443 = vst [vmem:[#allocation2 + $0x20] sm:$0xff] %v435
    %444 = vst [vmem:[#allocation2 + $0x28] sm:$0xff] %v436
    %445 = vst [vmem:[#allocation2 + $0x30] sm:$0xff] %v437
    %446 = vst [vmem:[#allocation2 + $0x38] sm:$0xff] %v438
  $region25: #{residual_connection.1} parent=0 // pred_fallthru
    _
  %v447 = vld [vmem:[#allocation2] sm:$0xff]
  %v448 = vld [vmem:[#allocation2 + $0x8] sm:$0xff]
  %v449 = vld [vmem:[#allocation2 + $0x10] sm:$0xff]
  %v450 = vld [vmem:[#allocation2 + $0x18] sm:$0xff]
  %v451 = vld [vmem:[#allocation2 + $0x20] sm:$0xff]
  %v452 = vld [vmem:[#allocation2 + $0x28] sm:$0xff]
  %v453 = vld [vmem:[#allocation2 + $0x30] sm:$0xff]
  %v454 = vld [vmem:[#allocation2 + $0x38] sm:$0xff]
  %v455 = vld [vmem:[%s3] sm:$0xf]
  %v456 = vld [vmem:[%s3 + $0x4] sm:$0xf]
  %v457 = vld [vmem:[%s3 + $0x8] sm:$0xf]
  %v458 = vld [vmem:[%s3 + $0xc] sm:$0xf]
  %v459 = vld [vmem:[%s3 + $0x10] sm:$0xf]
  %v460 = vld [vmem:[%s3 + $0x14] sm:$0xf]
  %v461 = vld [vmem:[%s3 + $0x18] sm:$0xf]
  %v462 = vld [vmem:[%s3 + $0x1c] sm:$0xf]
  %v463 = vld [vmem:[%s3 + $0x20] sm:$0xf]
  %v464 = vld [vmem:[%s3 + $0x24] sm:$0xf]
  %v465 = vld [vmem:[%s3 + $0x28] sm:$0xf]
  %v466 = vld [vmem:[%s3 + $0x2c] sm:$0xf]
  %v467 = vld [vmem:[%s3 + $0x30] sm:$0xf]
  %v468 = vld [vmem:[%s3 + $0x34] sm:$0xf]
  %v469 = vld [vmem:[%s3 + $0x38] sm:$0xf]
  %v470 = vld [vmem:[%s3 + $0x3c] sm:$0xf]
  %v471 = vld [vmem:[%s4] sm:$0x1]
  %v473 = vlaneseq
  %v474 = vshrl.u32 %v473, 7
  %v475 = vsub.s32 0, %v474
  %v476 = vrot.slane %v471, %v475
  %v494 = vunpack.c.l.b16 %v455
  %v495 = vunpack.c.l.b16 %v456
  %v496 = vunpack.c.l.b16 %v457
  %v497 = vunpack.c.l.b16 %v458
  %v498 = vunpack.c.l.b16 %v459
  %v499 = vunpack.c.l.b16 %v460
  %v500 = vunpack.c.l.b16 %v461
  %v501 = vunpack.c.l.b16 %v462
  %v502 = vunpack.c.l.b16 %v463
  %v503 = vunpack.c.l.b16 %v464
  %v504 = vunpack.c.l.b16 %v465
  %v505 = vunpack.c.l.b16 %v466
  %v506 = vunpack.c.l.b16 %v467
  %v507 = vunpack.c.l.b16 %v468
  %v508 = vunpack.c.l.b16 %v469
  %v509 = vunpack.c.l.b16 %v470
  %v510 = vpack.c.b16 %v495, %v494
  %v511 = vpack.c.b16 %v497, %v496
  %v512 = vpack.c.b16 %v499, %v498
  %v513 = vpack.c.b16 %v501, %v500
  %v514 = vpack.c.b16 %v503, %v502
  %v515 = vpack.c.b16 %v505, %v504
  %v516 = vpack.c.b16 %v507, %v506
  %v517 = vpack.c.b16 %v509, %v508
  %526 = vmatprep.subr.bf16.mxu0 0
  %527 = vmatpush1.bf16.msra.mxu0 %v510
  %528 = vmatprep.subr.bf16.mxu0 0
  %529 = vmatpush1.bf16.msra.mxu0 %v511
  %530 = vmatprep.subr.bf16.mxu0 0
  %531 = vmatpush1.bf16.msra.mxu0 %v512
  %532 = vmatprep.subr.bf16.mxu0 0
  %533 = vmatpush1.bf16.msra.mxu0 %v513
  %534 = vmatprep.subr.bf16.mxu0 0
  %535 = vmatpush1.bf16.msra.mxu0 %v514
  %536 = vmatprep.subr.bf16.mxu0 0
  %537 = vmatpush1.bf16.msra.mxu0 %v515
  %538 = vmatprep.subr.bf16.mxu0 0
  %539 = vmatpush1.bf16.msra.mxu0 %v516
  %540 = vmatprep.subr.bf16.mxu0 0
  %541 = vmatpush1.bf16.msra.mxu0 %v517
  %542 = vmatprep.subr.bf16.mxu0 0
  %543 = vmatpush1.bf16.msra.mxu0 0
  %544 = vmatprep.subr.bf16.mxu0 0
  %545 = vmatpush1.bf16.msra.mxu0 0
  %546 = vmatprep.subr.bf16.mxu0 0
  %547 = vmatpush1.bf16.msra.mxu0 0
  %548 = vmatprep.subr.bf16.mxu0 0
  %549 = vmatpush1.bf16.msra.mxu0 0
  %550 = vmatprep.subr.bf16.mxu0 0
  %551 = vmatpush1.bf16.msra.mxu0 0
  %552 = vmatprep.subr.bf16.mxu0 0
  %553 = vmatpush1.bf16.msra.mxu0 0
  %554 = vmatprep.subr.bf16.mxu0 0
  %555 = vmatpush1.bf16.msra.mxu0 0
  %556 = vmatprep.subr.bf16.mxu0 0
  %557 = vmatpush1.bf16.msra.mxu0 0
  %558 = vmatprep.mubr.bf16.mxu0 0
  %559 = vmatmul.mubr.bf16.gmra.mrb[0].mxu0 %v447
  %v560 = vpop.f32.mrb[0].mxu0
  %v561 = vadd.f32 %v476, %v560
  %v562 = vpop.f32.mrb[0].mxu0
  %v563 = vpop.f32.mrb[0].mxu0
  %v564 = vadd.f32 %v476, %v563
  %v565 = vpop.f32.mrb[0].mxu0
  %566 = vmatprep.mubr.bf16.mxu0 0
  %567 = vmatmul.mubr.bf16.gmra.mrb[0].mxu0 %v448
  %v568 = vpop.f32.mrb[0].mxu0
  %v569 = vadd.f32 %v476, %v568
  %v570 = vpop.f32.mrb[0].mxu0
  %v571 = vpop.f32.mrb[0].mxu0
  %v572 = vadd.f32 %v476, %v571
  %v573 = vpop.f32.mrb[0].mxu0
  %574 = vmatprep.mubr.bf16.mxu0 0
  %575 = vmatmul.mubr.bf16.gmra.mrb[0].mxu0 %v449
  %v576 = vpop.f32.mrb[0].mxu0
  %v577 = vadd.f32 %v476, %v576
  %v578 = vpop.f32.mrb[0].mxu0
  %v579 = vpop.f32.mrb[0].mxu0
  %v580 = vadd.f32 %v476, %v579
  %v581 = vpop.f32.mrb[0].mxu0
  %582 = vmatprep.mubr.bf16.mxu0 0
  %583 = vmatmul.mubr.bf16.gmra.mrb[0].mxu0 %v450
  %v584 = vpop.f32.mrb[0].mxu0
  %v585 = vadd.f32 %v476, %v584
  %v586 = vpop.f32.mrb[0].mxu0
  %v587 = vpop.f32.mrb[0].mxu0
  %v588 = vadd.f32 %v476, %v587
  %v589 = vpop.f32.mrb[0].mxu0
  %590 = vmatprep.mubr.bf16.mxu0 0
  %591 = vmatmul.mubr.bf16.gmra.mrb[0].mxu0 %v451
  %v592 = vpop.f32.mrb[0].mxu0
  %v593 = vadd.f32 %v476, %v592
  %v594 = vpop.f32.mrb[0].mxu0
  %v595 = vpop.f32.mrb[0].mxu0
  %v596 = vadd.f32 %v476, %v595
  %v597 = vpop.f32.mrb[0].mxu0
  %598 = vmatprep.mubr.bf16.mxu0 0
  %599 = vmatmul.mubr.bf16.gmra.mrb[0].mxu0 %v452
  %v600 = vpop.f32.mrb[0].mxu0
  %v601 = vadd.f32 %v476, %v600
  %v602 = vpop.f32.mrb[0].mxu0
  %v603 = vpop.f32.mrb[0].mxu0
  %v604 = vadd.f32 %v476, %v603
  %v605 = vpop.f32.mrb[0].mxu0
  %606 = vmatprep.mubr.bf16.mxu0 0
  %607 = vmatmul.mubr.bf16.gmra.mrb[0].mxu0 %v453
  %v608 = vpop.f32.mrb[0].mxu0
  %v609 = vadd.f32 %v476, %v608
  %v610 = vpop.f32.mrb[0].mxu0
  %v611 = vpop.f32.mrb[0].mxu0
  %v612 = vadd.f32 %v476, %v611
  %v613 = vpop.f32.mrb[0].mxu0
  %614 = vmatprep.mubr.bf16.mxu0 0
  %615 = vmatmul.mubr.bf16.gmra.mrb[0].mxu0 %v454
  %v616 = vpop.f32.mrb[0].mxu0
  %v617 = vadd.f32 %v476, %v616
  %v618 = vpop.f32.mrb[0].mxu0
  %v619 = vpop.f32.mrb[0].mxu0
  %v620 = vadd.f32 %v476, %v619
  %v621 = vpop.f32.mrb[0].mxu0
  %622 = vdwg.mxu0
  %s623 = smul.u32 0, 128
  %s624 = sshra.s32 %s623, 7
  %s625 = sand.u32 %s623, 127
  %s626 = scalar_lea.vmem %s2, %s624
  %v627 = vld [vmem:[%s626] sm:$0xff]
  %v628 = vld [vmem:[%s626 + $0x8] sm:$0xff]
  %v629 = vld [vmem:[%s626 + $0x10] sm:$0xff]
  %v630 = vld [vmem:[%s626 + $0x18] sm:$0xff]
  %v631 = vld [vmem:[%s626 + $0x20] sm:$0xff]
  %v632 = vld [vmem:[%s626 + $0x28] sm:$0xff]
  %v633 = vld [vmem:[%s626 + $0x30] sm:$0xff]
  %v634 = vld [vmem:[%s626 + $0x38] sm:$0xff]
  %v635 = vld [vmem:[%s626 + $0x40] sm:$0xff]
  %v636 = vld [vmem:[%s626 + $0x48] sm:$0xff]
  %v637 = vld [vmem:[%s626 + $0x50] sm:$0xff]
  %v638 = vld [vmem:[%s626 + $0x58] sm:$0xff]
  %v639 = vld [vmem:[%s626 + $0x60] sm:$0xff]
  %v640 = vld [vmem:[%s626 + $0x68] sm:$0xff]
  %v641 = vld [vmem:[%s626 + $0x70] sm:$0xff]
  %v642 = vld [vmem:[%s626 + $0x78] sm:$0xff]
  %v643 = vadd.f32 %v627, %v561
  %v644 = vadd.f32 %v628, %v564
  %v645 = vadd.f32 %v629, %v569
  %v646 = vadd.f32 %v630, %v572
  %v647 = vadd.f32 %v631, %v577
  %v648 = vadd.f32 %v632, %v580
  %v649 = vadd.f32 %v633, %v585
  %v650 = vadd.f32 %v634, %v588
  %v651 = vadd.f32 %v635, %v593
  %v652 = vadd.f32 %v636, %v596
  %v653 = vadd.f32 %v637, %v601
  %v654 = vadd.f32 %v638, %v604
  %v655 = vadd.f32 %v639, %v609
  %v656 = vadd.f32 %v640, %v612
  %v657 = vadd.f32 %v641, %v617
  %v658 = vadd.f32 %v642, %v620
  %659 = vst [vmem:[%s5] sm:$0xff] %v643
  %660 = vst [vmem:[%s5 + $0x8] sm:$0xff] %v644
  %661 = vst [vmem:[%s5 + $0x10] sm:$0xff] %v645
  %662 = vst [vmem:[%s5 + $0x18] sm:$0xff] %v646
  %663 = vst [vmem:[%s5 + $0x20] sm:$0xff] %v647
  %664 = vst [vmem:[%s5 + $0x28] sm:$0xff] %v648
  %665 = vst [vmem:[%s5 + $0x30] sm:$0xff] %v649
  %666 = vst [vmem:[%s5 + $0x38] sm:$0xff] %v650
  %667 = vst [vmem:[%s5 + $0x40] sm:$0xff] %v651
  %668 = vst [vmem:[%s5 + $0x48] sm:$0xff] %v652
  %669 = vst [vmem:[%s5 + $0x50] sm:$0xff] %v653
  %670 = vst [vmem:[%s5 + $0x58] sm:$0xff] %v654
  %671 = vst [vmem:[%s5 + $0x60] sm:$0xff] %v655
  %672 = vst [vmem:[%s5 + $0x68] sm:$0xff] %v656
  %673 = vst [vmem:[%s5 + $0x70] sm:$0xff] %v657
  %674 = vst [vmem:[%s5 + $0x78] sm:$0xff] %v658
  // Predicated region
  $region26: #{residual_connection.1} parent=0 // pred_check
    _
  $region27: #{residual_connection.1} parent=0 // pred_check_branch
    %676 = sbr.rel (0) target = $region29
  $region28: #{residual_connection.1} parent=0 // pred_region
    _
  $region29: #{residual_connection.1} parent=0 // pred_fallthru
    _
  // Predicated region
  $region30: #{residual_connection.1} parent=0 // pred_check
    _
  $region31: #{residual_connection.1} parent=0 // pred_check_branch
    %678 = sbr.rel (0) target = $region33
  $region32: #{residual_connection.1} parent=0 // pred_region
    _
  $region33: #{residual_connection.1} parent=0 // pred_fallthru
    _

</llo_original>
